<compile_context>
chip_gen: v5e
topology: v5e:2x2
jax: 0.10.0
libtpu: 0.0.40
codegen_flags: <defaults>
</compile_context>

<pallas_src>
import math

import numpy as np
import jax
import jax.numpy as jnp
from jax import lax
from jax.experimental import pallas as pl
from jax.experimental.pallas import tpu as pltpu


def attention_kernel(k_ref, q_ref, wk_ref, bk_ref, wqbd_ref, bqbd_ref,
                     hmask_ref, seg_ref, wp_ref, bp_ref, fused_ref):
    """One grid step == `bb` batch elements.  F = n_head*hidden_dim, NK = n_head*k_len.

    k_ref     : (bb, k_len, embed_dim)
    q_ref     : (bb, q_len, embed_dim)
    wk_ref    : (embed_dim, F)          bk_ref   : (1, F)
    wqbd_ref  : (embed_dim, F)          bqbd_ref : (1, F)   (bilinear W folded in)
    hmask_ref : (NK, F)   hmask[h*k_len+j, h'*H+e] = (h == h')
    seg_ref   : (NK, NK)  seg[h*k_len+j', h'*k_len+j] = (h == h')
    wp_ref    : (F, out_dim)            bp_ref   : (1, out_dim)
    fused_ref : (bb*q_len, out_dim + NK)   [ projected output | per-head scores ]
    """
    bb, k_len, embed_dim = k_ref.shape
    q_len = q_ref.shape[1]
    F = wk_ref.shape[1]
    NK = seg_ref.shape[0]
    n_head = NK // k_len
    f32 = jnp.float32

    # --- projections: all batches & all heads in one lane-dense MXU matmul each ----
    k2 = k_ref[...].reshape(bb * k_len, embed_dim)
    q2 = q_ref[...].reshape(bb * q_len, embed_dim)
    kx = jnp.dot(k2, wk_ref[...], preferred_element_type=f32) + bk_ref[...]
    # Bilinear weight is folded into the Q projection (wq @ blockdiag(W)) -> qw directly.
    qw = jnp.dot(q2, wqbd_ref[...], preferred_element_type=f32) + bqbd_ref[...]

    kx3 = kx.reshape(bb, k_len, F)
    qw3 = qw.reshape(bb, q_len, F)

    # Head-replicated, head-masked keys: row (h*k_len + j) holds kx[j] restricted to
    # head h's feature block (sublane concat + one VPU mask multiply).
    kx_rep = jnp.concatenate([kx3] * n_head, axis=1) * hmask_ref[...]     # (bb, NK, F)

    # All-head bilinear scores, lane-dense (flash-style contraction):
    #   s[b, i, h*k_len + j] = sum_e qw[b, i, h*H+e] * kx[b, j, h*H+e]
    s = jnp.einsum('bqf,bkf->bqk', qw3, kx_rep,
                   preferred_element_type=f32)                            # (bb, q_len, NK)

    # Stacked per-head softmax over each k_len-wide lane group.  Subtracting the
    # row-global max is a per-group-constant shift, so the result is exact softmax.
    s2 = s.reshape(bb * q_len, NK)
    m = jnp.max(s2, axis=-1, keepdims=True)
    e = jnp.exp(s2 - m)
    denom = jnp.dot(e, seg_ref[...], preferred_element_type=f32)   # per-head sums, bcast
    p2 = e / denom                                                 # exact divide
    p3 = p2.reshape(bb, q_len, NK)

    # Per-head weighted sum; lands directly in the torch concat-of-heads layout
    #   cat[b, i, h*H+e] = sum_j p[b, i, h*k_len+j] * kx[b, j, h*H+e]
    cat = jnp.einsum('bqk,bkf->bqf', p3, kx_rep,
                     preferred_element_type=f32)                          # (bb, q_len, F)
    cat2 = cat.reshape(bb * q_len, F)
    out = jnp.dot(cat2, wp_ref[...], preferred_element_type=f32) + bp_ref[...]

    # Single fused lane-dense store: [ output (out_dim) | scores (NK) ].
    fused = jnp.concatenate([out, p2], axis=-1)
    fused_ref[...] = fused.astype(fused_ref.dtype)


def attention_forward(k, q, params, *, n_head, hidden_dim, batch_block=None):
    """k: (mb, k_len, E), q: (mb, q_len, E). Returns (output, score) matching torch."""
    if k.ndim == 2:
        k = k[:, None, :]
    if q.ndim == 2:
        q = q[:, None, :]
    mb, k_len, embed_dim = k.shape
    q_len = q.shape[1]
    out_dim = params["wp"].shape[1]
    NK = n_head * k_len
    W = out_dim + NK
    f32 = jnp.float32
    hp = lax.Precision.HIGHEST

    # batch_block = mb -> single grid step (v5e/v6e); use mb//2 on v7x to split across
    # the two TensorCores (grid axis is "parallel").
    if batch_block is None:
        batch_block = mb
    assert mb % batch_block == 0
    nb = mb // batch_block

    # Host-built head-structure constants (depend only on n_head / k_len / hidden_dim).
    eye_np = np.eye(n_head, dtype=np.float32)
    hmask = jnp.asarray(np.kron(eye_np, np.ones((k_len, hidden_dim), np.float32)))  # (NK, F)
    seg = jnp.asarray(np.kron(eye_np, np.ones((k_len, k_len), np.float32)))         # (NK, NK)

    # Fold the bilinear weight (block-diagonal over heads) into the Q projection.
    wbd = jnp.kron(jnp.eye(n_head, dtype=f32), params["bil"].astype(f32))            # (F, F)
    wqbd = jnp.dot(params["wq"].astype(f32), wbd, precision=hp)                      # (E, F)
    bqbd = jnp.dot(params["bq"].astype(f32), wbd, precision=hp)                      # (1, F)

    full = lambda a: pl.BlockSpec(a.shape, lambda g: (0,) * a.ndim)

    fused = pl.pallas_call(
        attention_kernel,
        out_shape=jax.ShapeDtypeStruct((mb * q_len, W), jnp.float32),
        grid_spec=pltpu.PrefetchScalarGridSpec(
            num_scalar_prefetch=0,
            grid=(nb,),
            in_specs=[
                pl.BlockSpec((batch_block, k_len, embed_dim), lambda g: (g, 0, 0)),
                pl.BlockSpec((batch_block, q_len, embed_dim), lambda g: (g, 0, 0)),
                full(params["wk"]), full(params["bk"]),
                full(wqbd), full(bqbd),
                full(hmask), full(seg),
                full(params["wp"]), full(params["bp"]),
            ],
            out_specs=pl.BlockSpec((batch_block * q_len, W), lambda g: (g, 0)),
        ),
        compiler_params=pltpu.CompilerParams(dimension_semantics=("parallel",)),
    )(k, q, params["wk"], params["bk"], wqbd, bqbd, hmask, seg,
      params["wp"], params["bp"])

    fused = fused.reshape(mb, q_len, W)
    out = fused[:, :, :out_dim]
    score = fused[:, :, out_dim:]                                   # (mb, q_len, NK)
    # (mb, q_len, n_head*k_len) -> (n_head*mb, q_len, k_len)  (torch score layout)
    score = score.reshape(mb, q_len, n_head, k_len).transpose(2, 0, 1, 3)
    score = score.reshape(n_head * mb, q_len, k_len)
    return out, score


def reference_forward(k, q, params, *, n_head, hidden_dim):
    """Pure-JAX reference mirroring the torch code (bi_linear, no dropout)."""
    mb, k_len, _ = k.shape
    q_len = q.shape[1]
    hp = lax.Precision.HIGHEST
    kx = jnp.einsum("ble,eo->blo", k, params["wk"], precision=hp) + params["bk"][0]
    qx = jnp.einsum("ble,eo->blo", q, params["wq"], precision=hp) + params["bq"][0]
    kx = kx.reshape(mb, k_len, n_head, hidden_dim).transpose(2, 0, 1, 3).reshape(-1, k_len, hidden_dim)
    qx = qx.reshape(mb, q_len, n_head, hidden_dim).transpose(2, 0, 1, 3).reshape(-1, q_len, hidden_dim)
    qw = jnp.einsum("bqh,hd->bqd", qx, params["bil"], precision=hp)
    score = jnp.einsum("bqd,bkd->bqk", qw, kx, precision=hp)
    score = jax.nn.softmax(score, axis=-1)
    out = jnp.einsum("bqk,bkh->bqh", score, kx, precision=hp)
    out = jnp.concatenate(jnp.split(out, n_head, axis=0), axis=-1)   # (mb, q_len, n_head*H)
    out = jnp.einsum("bqh,ho->bqo", out, params["wp"], precision=hp) + params["bp"][0]
    return out, score


if __name__ == "__main__":
    # Small shapes consistent with the module.
    mb = 2
    k_len = 8
    q_len = 8
    n_head = 12
    embed_dim = 48                      # divisible by n_head
    hidden_dim = embed_dim // n_head    # 4
    out_dim = embed_dim

    key = jax.random.PRNGKey(0)
    keys = jax.random.split(key, 10)

    stdv_lin = 1.0 / math.sqrt(embed_dim)
    stdv_proj = 1.0 / math.sqrt(n_head * hidden_dim)
    stdv_bil = 1.0 / math.sqrt(hidden_dim)

    params = {
        "wk": jax.random.uniform(keys[0], (embed_dim, n_head * hidden_dim),
                                 jnp.float32, -stdv_lin, stdv_lin),
        "bk": jax.random.uniform(keys[1], (1, n_head * hidden_dim),
                                 jnp.float32, -stdv_lin, stdv_lin),
        "wq": jax.random.uniform(keys[2], (embed_dim, n_head * hidden_dim),
                                 jnp.float32, -stdv_lin, stdv_lin),
        "bq": jax.random.uniform(keys[3], (1, n_head * hidden_dim),
                                 jnp.float32, -stdv_lin, stdv_lin),
        "bil": jax.random.uniform(keys[4], (hidden_dim, hidden_dim),
                                  jnp.float32, -stdv_bil, stdv_bil),
        "wp": jax.random.uniform(keys[5], (n_head * hidden_dim, out_dim),
                                 jnp.float32, -stdv_proj, stdv_proj),
        "bp": jax.random.uniform(keys[6], (1, out_dim),
                                 jnp.float32, -stdv_proj, stdv_proj),
    }

    k = jax.random.normal(keys[7], (mb, k_len, embed_dim), jnp.float32)
    q = jax.random.normal(keys[8], (mb, q_len, embed_dim), jnp.float32)

    out, score = attention_forward(k, q, params, n_head=n_head, hidden_dim=hidden_dim)
    out = jax.block_until_ready(out)
    score = jax.block_until_ready(score)

    ref_out, ref_score = reference_forward(k, q, params, n_head=n_head, hidden_dim=hidden_dim)
    assert out.shape == (mb, q_len, out_dim)
    assert score.shape == (n_head * mb, q_len, k_len)
    assert jnp.allclose(out, ref_out, atol=2e-4, rtol=2e-4)
    assert jnp.allclose(score, ref_score, atol=2e-4, rtol=2e-4)

    print("KERNEL_OK")
</pallas_src>

<mosaic_0001>
module attributes {stable_mosaic.version = 11 : i64} {
  func.func @attention_kernel(%arg0: i32, %arg1: memref<2x8x48xf32, #tpu.memory_space<vmem>>, %arg2: memref<2x8x48xf32, #tpu.memory_space<vmem>>, %arg3: memref<48x48xf32, #tpu.memory_space<vmem>>, %arg4: memref<1x48xf32, #tpu.memory_space<vmem>>, %arg5: memref<48x48xf32, #tpu.memory_space<vmem>>, %arg6: memref<1x48xf32, #tpu.memory_space<vmem>>, %arg7: memref<96x48xf32, #tpu.memory_space<vmem>>, %arg8: memref<96x96xf32, #tpu.memory_space<vmem>>, %arg9: memref<48x48xf32, #tpu.memory_space<vmem>>, %arg10: memref<1x48xf32, #tpu.memory_space<vmem>>, %arg11: memref<16x144xf32, #tpu.memory_space<vmem>>) attributes {dimension_semantics = [#tpu.dimension_semantics<parallel>], iteration_bounds = array<i64: 1>, scalar_prefetch = 0 : i64, scratch_operands = 0 : i64, tpu.core_type = #tpu.core_type<tc>, window_params = [{transform_indices = @transform_0, window_bounds = array<i64: 2, 8, 48>}, {transform_indices = @transform_1, window_bounds = array<i64: 2, 8, 48>}, {pipeline_mode = #tpu.pipeline_mode<synchronous>, transform_indices = @transform_2, window_bounds = array<i64: 48, 48>}, {pipeline_mode = #tpu.pipeline_mode<synchronous>, transform_indices = @transform_3, window_bounds = array<i64: 1, 48>}, {pipeline_mode = #tpu.pipeline_mode<synchronous>, transform_indices = @transform_4, window_bounds = array<i64: 48, 48>}, {pipeline_mode = #tpu.pipeline_mode<synchronous>, transform_indices = @transform_5, window_bounds = array<i64: 1, 48>}, {pipeline_mode = #tpu.pipeline_mode<synchronous>, transform_indices = @transform_6, window_bounds = array<i64: 96, 48>}, {pipeline_mode = #tpu.pipeline_mode<synchronous>, transform_indices = @transform_7, window_bounds = array<i64: 96, 96>}, {pipeline_mode = #tpu.pipeline_mode<synchronous>, transform_indices = @transform_8, window_bounds = array<i64: 48, 48>}, {pipeline_mode = #tpu.pipeline_mode<synchronous>, transform_indices = @transform_9, window_bounds = array<i64: 1, 48>}, {transform_indices = @transform_10, window_bounds = array<i64: 16, 144>}]} {
    %c0 = arith.constant 0 : index
    %c0_0 = arith.constant 0 : index
    %c0_1 = arith.constant 0 : index
    %0 = vector.load %arg1[%c0, %c0_0, %c0_1] : memref<2x8x48xf32, #tpu.memory_space<vmem>>, vector<2x8x48xf32>
    %1 = vector.shape_cast %0 : vector<2x8x48xf32> to vector<16x48xf32>
    %c0_2 = arith.constant 0 : index
    %c0_3 = arith.constant 0 : index
    %c0_4 = arith.constant 0 : index
    %2 = vector.load %arg2[%c0_2, %c0_3, %c0_4] : memref<2x8x48xf32, #tpu.memory_space<vmem>>, vector<2x8x48xf32>
    %3 = vector.shape_cast %2 : vector<2x8x48xf32> to vector<16x48xf32>
    %c0_5 = arith.constant 0 : index
    %c0_6 = arith.constant 0 : index
    %4 = vector.load %arg3[%c0_5, %c0_6] : memref<48x48xf32, #tpu.memory_space<vmem>>, vector<48x48xf32>
    %cst = arith.constant dense<0.000000e+00> : vector<16x48xf32>
    %5 = tpu.matmul %1, %4, %cst {dimension_numbers = #tpu.dot_dimension_numbers<[1], [0], [0], [1], [0, 0, 1, 1], [], []>} : vector<16x48xf32>, vector<48x48xf32>, vector<16x48xf32> -> vector<16x48xf32>
    %c0_7 = arith.constant 0 : index
    %c0_8 = arith.constant 0 : index
    %6 = vector.load %arg4[%c0_7, %c0_8] : memref<1x48xf32, #tpu.memory_space<vmem>>, vector<1x48xf32>
    %7 = vector.broadcast %6 : vector<1x48xf32> to vector<16x48xf32>
    %8 = arith.addf %5, %7 : vector<16x48xf32>
    %c0_9 = arith.constant 0 : index
    %c0_10 = arith.constant 0 : index
    %9 = vector.load %arg5[%c0_9, %c0_10] : memref<48x48xf32, #tpu.memory_space<vmem>>, vector<48x48xf32>
    %cst_11 = arith.constant dense<0.000000e+00> : vector<16x48xf32>
    %10 = tpu.matmul %3, %9, %cst_11 {dimension_numbers = #tpu.dot_dimension_numbers<[1], [0], [0], [1], [0, 0, 1, 1], [], []>} : vector<16x48xf32>, vector<48x48xf32>, vector<16x48xf32> -> vector<16x48xf32>
    %c0_12 = arith.constant 0 : index
    %c0_13 = arith.constant 0 : index
    %11 = vector.load %arg6[%c0_12, %c0_13] : memref<1x48xf32, #tpu.memory_space<vmem>>, vector<1x48xf32>
    %12 = vector.broadcast %11 : vector<1x48xf32> to vector<16x48xf32>
    %13 = arith.addf %10, %12 : vector<16x48xf32>
    %14 = vector.shape_cast %8 : vector<16x48xf32> to vector<2x8x48xf32>
    %15 = vector.shape_cast %13 : vector<16x48xf32> to vector<2x8x48xf32>
    %16 = tpu.concatenate %14, %14, %14, %14, %14, %14, %14, %14, %14, %14, %14, %14 in 1 : vector<2x8x48xf32>, vector<2x8x48xf32>, vector<2x8x48xf32>, vector<2x8x48xf32>, vector<2x8x48xf32>, vector<2x8x48xf32>, vector<2x8x48xf32>, vector<2x8x48xf32>, vector<2x8x48xf32>, vector<2x8x48xf32>, vector<2x8x48xf32>, vector<2x8x48xf32> -> vector<2x96x48xf32>
    %c0_14 = arith.constant 0 : index
    %c0_15 = arith.constant 0 : index
    %17 = vector.load %arg7[%c0_14, %c0_15] : memref<96x48xf32, #tpu.memory_space<vmem>>, vector<96x48xf32>
    %18 = vector.shape_cast %17 : vector<96x48xf32> to vector<1x96x48xf32>
    %19 = vector.broadcast %18 : vector<1x96x48xf32> to vector<2x96x48xf32>
    %20 = arith.mulf %16, %19 : vector<2x96x48xf32>
    "tpu.trace_start"() <{level = 10 : i32, message = "bqf,bkf->bqk"}> : () -> ()
    %cst_16 = arith.constant dense<0.000000e+00> : vector<2x8x96xf32>
    %21 = tpu.matmul %15, %20, %cst_16 {dimension_numbers = #tpu.dot_dimension_numbers<[2], [2], [1], [1], [0, 0, 0, 1, 1, 1], [0], [0]>} : vector<2x8x48xf32>, vector<2x96x48xf32>, vector<2x8x96xf32> -> vector<2x8x96xf32>
    "tpu.trace_stop"() : () -> ()
    %22 = vector.shape_cast %21 : vector<2x8x96xf32> to vector<16x96xf32>
    %cst_17 = arith.constant dense<0xFF800000> : vector<16xf32>
    %23 = vector.multi_reduction <maximumf>, %22, %cst_17 [1] : vector<16x96xf32> to vector<16xf32>
    %24 = vector.shape_cast %23 : vector<16xf32> to vector<16x1xf32>
    %25 = vector.broadcast %24 : vector<16x1xf32> to vector<16x96xf32>
    %26 = arith.subf %22, %25 : vector<16x96xf32>
    %27 = math.exp %26 : vector<16x96xf32>
    %c0_18 = arith.constant 0 : index
    %c0_19 = arith.constant 0 : index
    %28 = vector.load %arg8[%c0_18, %c0_19] : memref<96x96xf32, #tpu.memory_space<vmem>>, vector<96x96xf32>
    %cst_20 = arith.constant dense<0.000000e+00> : vector<16x96xf32>
    %29 = tpu.matmul %27, %28, %cst_20 {dimension_numbers = #tpu.dot_dimension_numbers<[1], [0], [0], [1], [0, 0, 1, 1], [], []>} : vector<16x96xf32>, vector<96x96xf32>, vector<16x96xf32> -> vector<16x96xf32>
    %30 = arith.divf %27, %29 : vector<16x96xf32>
    %31 = vector.shape_cast %30 : vector<16x96xf32> to vector<2x8x96xf32>
    "tpu.trace_start"() <{level = 10 : i32, message = "bqk,bkf->bqf"}> : () -> ()
    %cst_21 = arith.constant dense<0.000000e+00> : vector<2x8x48xf32>
    %32 = tpu.matmul %31, %20, %cst_21 {dimension_numbers = #tpu.dot_dimension_numbers<[2], [1], [1], [2], [0, 0, 0, 1, 1, 2], [0], [0]>} : vector<2x8x96xf32>, vector<2x96x48xf32>, vector<2x8x48xf32> -> vector<2x8x48xf32>
    "tpu.trace_stop"() : () -> ()
    %33 = vector.shape_cast %32 : vector<2x8x48xf32> to vector<16x48xf32>
    %c0_22 = arith.constant 0 : index
    %c0_23 = arith.constant 0 : index
    %34 = vector.load %arg9[%c0_22, %c0_23] : memref<48x48xf32, #tpu.memory_space<vmem>>, vector<48x48xf32>
    %cst_24 = arith.constant dense<0.000000e+00> : vector<16x48xf32>
    %35 = tpu.matmul %33, %34, %cst_24 {dimension_numbers = #tpu.dot_dimension_numbers<[1], [0], [0], [1], [0, 0, 1, 1], [], []>} : vector<16x48xf32>, vector<48x48xf32>, vector<16x48xf32> -> vector<16x48xf32>
    %c0_25 = arith.constant 0 : index
    %c0_26 = arith.constant 0 : index
    %36 = vector.load %arg10[%c0_25, %c0_26] : memref<1x48xf32, #tpu.memory_space<vmem>>, vector<1x48xf32>
    %37 = vector.broadcast %36 : vector<1x48xf32> to vector<16x48xf32>
    %38 = arith.addf %35, %37 : vector<16x48xf32>
    %39 = tpu.concatenate %38, %30 in 1 : vector<16x48xf32>, vector<16x96xf32> -> vector<16x144xf32>
    %c0_27 = arith.constant 0 : index
    %c0_28 = arith.constant 0 : index
    %40 = vector.load %arg11[%c0_27, %c0_28] : memref<16x144xf32, #tpu.memory_space<vmem>>, vector<16x144xf32>
    tpu.vector_store %arg11[%c0_27, %c0_28], %39 {strides = array<i32>} : memref<16x144xf32, #tpu.memory_space<vmem>>, vector<16x144xf32>,
    return
  }
  func.func @transform_0(%arg0: i32) -> (i32, i32, i32) {
    %c0_i32 = arith.constant 0 : i32
    %c0_i32_0 = arith.constant 0 : i32
    %c0_i32_1 = arith.constant 0 : i32
    return %arg0, %c0_i32, %c0_i32_0 : i32, i32, i32
  }
  func.func @transform_1(%arg0: i32) -> (i32, i32, i32) {
    %c0_i32 = arith.constant 0 : i32
    %c0_i32_0 = arith.constant 0 : i32
    %c0_i32_1 = arith.constant 0 : i32
    return %arg0, %c0_i32, %c0_i32_0 : i32, i32, i32
  }
  func.func @transform_2(%arg0: i32) -> (i32, i32) {
    %c0_i32 = arith.constant 0 : i32
    %c0_i32_0 = arith.constant 0 : i32
    %c0_i32_1 = arith.constant 0 : i32
    return %c0_i32, %c0_i32_0 : i32, i32
  }
  func.func @transform_3(%arg0: i32) -> (i32, i32) {
    %c0_i32 = arith.constant 0 : i32
    %c0_i32_0 = arith.constant 0 : i32
    %c0_i32_1 = arith.constant 0 : i32
    return %c0_i32, %c0_i32_0 : i32, i32
  }
  func.func @transform_4(%arg0: i32) -> (i32, i32) {
    %c0_i32 = arith.constant 0 : i32
    %c0_i32_0 = arith.constant 0 : i32
    %c0_i32_1 = arith.constant 0 : i32
    return %c0_i32, %c0_i32_0 : i32, i32
  }
  func.func @transform_5(%arg0: i32) -> (i32, i32) {
    %c0_i32 = arith.constant 0 : i32
    %c0_i32_0 = arith.constant 0 : i32
    %c0_i32_1 = arith.constant 0 : i32
    return %c0_i32, %c0_i32_0 : i32, i32
  }
  func.func @transform_6(%arg0: i32) -> (i32, i32) {
    %c0_i32 = arith.constant 0 : i32
    %c0_i32_0 = arith.constant 0 : i32
    %c0_i32_1 = arith.constant 0 : i32
    return %c0_i32, %c0_i32_0 : i32, i32
  }
  func.func @transform_7(%arg0: i32) -> (i32, i32) {
    %c0_i32 = arith.constant 0 : i32
    %c0_i32_0 = arith.constant 0 : i32
    %c0_i32_1 = arith.constant 0 : i32
    return %c0_i32, %c0_i32_0 : i32, i32
  }
  func.func @transform_8(%arg0: i32) -> (i32, i32) {
    %c0_i32 = arith.constant 0 : i32
    %c0_i32_0 = arith.constant 0 : i32
    %c0_i32_1 = arith.constant 0 : i32
    return %c0_i32, %c0_i32_0 : i32, i32
  }
  func.func @transform_9(%arg0: i32) -> (i32, i32) {
    %c0_i32 = arith.constant 0 : i32
    %c0_i32_0 = arith.constant 0 : i32
    %c0_i32_1 = arith.constant 0 : i32
    return %c0_i32, %c0_i32_0 : i32, i32
  }
  func.func @transform_10(%arg0: i32) -> (i32, i32) {
    %c0_i32 = arith.constant 0 : i32
    %c0_i32_0 = arith.constant 0 : i32
    return %arg0, %c0_i32 : i32, i32
  }
}

</mosaic_0001>

<llo_original>
// kernel: tpu_custom_call.1
$region0: #{tpu_custom_call.1}
  #allocation0 [shape = 'u32[]', space=smem, size = 0x4, offset = 0x4, fixed_abs, tag = 'smem constant byte address 0x4 - core index']
  #allocation1 [shape = 'u32[72,128]{1,0:T(1,128)}', space=vmem, size = 0x9000, scoped, tag = 'internal scratch']
  %s0 = inlined_call_operand.hbm [shape: f32[2,8,48], index: 0, kind: input, shape index: {}]
  %s1 = inlined_call_operand.hbm [shape: f32[2,8,48], index: 1, kind: input, shape index: {}]
  %s2 = inlined_call_operand.vmem [shape: f32[48,48], index: 2, kind: input, shape index: {}]
  %s3 = inlined_call_operand.vmem [shape: f32[1,48], index: 3, kind: input, shape index: {}]
  %s4 = inlined_call_operand.hbm [shape: f32[48,48], index: 4, kind: input, shape index: {}]
  %s5 = inlined_call_operand.vmem [shape: f32[1,48], index: 5, kind: input, shape index: {}]
  %s6 = inlined_call_operand.vmem [shape: f32[96,48], index: 6, kind: input, shape index: {}]
  %s7 = inlined_call_operand.vmem [shape: f32[96,96], index: 7, kind: input, shape index: {}]
  %s8 = inlined_call_operand.hbm [shape: f32[48,48], index: 8, kind: input, shape index: {}]
  %s9 = inlined_call_operand.vmem [shape: f32[1,48], index: 9, kind: input, shape index: {}]
  %s10 = inlined_call_operand.hbm [shape: f32[16,144], index: 10, kind: output, shape index: {}]
  %s11 = sld [smem:[#allocation0]]
  $region66: #{tpu_custom_call.1} parent=0
    _
  %s13 = ssub.s32 1, %s11
  %s14 = scalar_select 0, %s13, %s11
  $region1: #{tpu_custom_call.1} parent=0
    #allocation2 [shape = 'u8[8192]{0}', space=vmem, size = 0x2000, scoped, tag = 'input window, operand 0, single buffered']
    #allocation3 [shape = 's32[1]{0}', space=sflag, size = 0x4, scoped, tag = 'scoped memory for tpu_custom_call.1']
    #allocation4 [shape = 's32[1]{0}', space=sflag, size = 0x4, scoped, tag = 'scoped memory for tpu_custom_call.1']
    #allocation5 [shape = 'u8[8192]{0}', space=vmem, size = 0x2000, scoped, tag = 'input window, operand 1, single buffered']
    #allocation6 [shape = 's32[1]{0}', space=sflag, size = 0x4, scoped, tag = 'scoped memory for tpu_custom_call.1']
    #allocation7 [shape = 'u8[24576]{0}', space=vmem, size = 0x6000, scoped, tag = 'input window, operand 4, single buffered']
    #allocation8 [shape = 'u8[24576]{0}', space=vmem, size = 0x6000, scoped, tag = 'input window, operand 8, single buffered']
    #allocation9 [shape = 's32[1]{0}', space=sflag, size = 0x4, scoped, tag = 'scoped memory for tpu_custom_call.1']
    #allocation10 [shape = 'u8[16384]{0}', space=vmem, size = 0x4000, scoped, tag = 'output window, operand 0, single buffered']
    %15 = vsyncpa [#allocation3], 0
    %16 = vsyncpa [#allocation6], 0
    %17 = vsyncpa [#allocation9], 0
    %18 = vsyncpa [#allocation4], 0
    // Predicated region
    $region2: #{tpu_custom_call.1} parent=1 // pred_check
      _
    $region3: #{tpu_custom_call.1} parent=1 // pred_check_branch
      %20 = sbr.rel (0) target = $region5
    $region4: #{tpu_custom_call.1} parent=1 // pred_region
      %22 = vsyncadd [#allocation3], 0
      %s23 = sshll.u32 %s0, 4
      %s24 = int_to_ptr.hbm [resolvable:$true] %s23
      %s25 = sshll.u32 [#allocation2], 4
      %s26 = int_to_ptr.vmem [resolvable:$true] %s25
      %31 = dma.hbm_to_vmem [thread:$0]  %s24, 256, %s26, [#allocation3], 128, 128, 8
    $region5: #{tpu_custom_call.1} parent=1 // pred_fallthru
      _
    // Predicated region
    $region6: #{tpu_custom_call.1} parent=1 // pred_check
      _
    $region7: #{tpu_custom_call.1} parent=1 // pred_check_branch
      %33 = sbr.rel (0) target = $region9
    $region8: #{tpu_custom_call.1} parent=1 // pred_region
      %35 = vsyncadd [#allocation6], 0
      %s36 = sshll.u32 %s1, 4
      %s37 = int_to_ptr.hbm [resolvable:$true] %s36
      %s38 = sshll.u32 [#allocation5], 4
      %s39 = int_to_ptr.vmem [resolvable:$true] %s38
      %44 = dma.hbm_to_vmem [thread:$0]  %s37, 256, %s39, [#allocation6], 128, 128, 8
    $region9: #{tpu_custom_call.1} parent=1 // pred_fallthru
      _
    // Predicated region
    $region10: #{tpu_custom_call.1} parent=1 // pred_check
      _
    $region11: #{tpu_custom_call.1} parent=1 // pred_check_branch
      %46 = sbr.rel (0) target = $region13
    $region12: #{tpu_custom_call.1} parent=1 // pred_region
      _
    $region13: #{tpu_custom_call.1} parent=1 // pred_fallthru
      _
    // Predicated region
    $region14: #{tpu_custom_call.1} parent=1 // pred_check
      _
    $region15: #{tpu_custom_call.1} parent=1 // pred_check_branch
      %48 = sbr.rel (0) target = $region17
    $region16: #{tpu_custom_call.1} parent=1 // pred_region
      _
    $region17: #{tpu_custom_call.1} parent=1 // pred_fallthru
      _
    // Predicated region
    $region18: #{tpu_custom_call.1} parent=1 // pred_check
      _
    $region19: #{tpu_custom_call.1} parent=1 // pred_check_branch
      %50 = sbr.rel (0) target = $region21
    $region20: #{tpu_custom_call.1} parent=1 // pred_region
      %52 = vsyncadd [#allocation6], 0
      %s53 = sshll.u32 %s4, 4
      %s54 = int_to_ptr.hbm [resolvable:$true] %s53
      %s55 = sshll.u32 [#allocation7], 4
      %s56 = int_to_ptr.vmem [resolvable:$true] %s55
      %61 = dma.hbm_to_vmem [thread:$0]  %s54, 768, %s56, [#allocation6], 128, 128, 8
    $region21: #{tpu_custom_call.1} parent=1 // pred_fallthru
      _
    // Predicated region
    $region22: #{tpu_custom_call.1} parent=1 // pred_check
      _
    $region23: #{tpu_custom_call.1} parent=1 // pred_check_branch
      %63 = sbr.rel (0) target = $region25
    $region24: #{tpu_custom_call.1} parent=1 // pred_region
      _
    $region25: #{tpu_custom_call.1} parent=1 // pred_fallthru
      _
    // Predicated region
    $region26: #{tpu_custom_call.1} parent=1 // pred_check
      _
    $region27: #{tpu_custom_call.1} parent=1 // pred_check_branch
      %65 = sbr.rel (0) target = $region29
    $region28: #{tpu_custom_call.1} parent=1 // pred_region
      _
    $region29: #{tpu_custom_call.1} parent=1 // pred_fallthru
      _
    // Predicated region
    $region30: #{tpu_custom_call.1} parent=1 // pred_check
      _
    $region31: #{tpu_custom_call.1} parent=1 // pred_check_branch
      %67 = sbr.rel (0) target = $region33
    $region32: #{tpu_custom_call.1} parent=1 // pred_region
      _
    $region33: #{tpu_custom_call.1} parent=1 // pred_fallthru
      _
    // Predicated region
    $region34: #{tpu_custom_call.1} parent=1 // pred_check
      _
    $region35: #{tpu_custom_call.1} parent=1 // pred_check_branch
      %69 = sbr.rel (0) target = $region37
    $region36: #{tpu_custom_call.1} parent=1 // pred_region
      %71 = vsyncadd [#allocation9], 0
      %s72 = sshll.u32 %s8, 4
      %s73 = int_to_ptr.hbm [resolvable:$true] %s72
      %s74 = sshll.u32 [#allocation8], 4
      %s75 = int_to_ptr.vmem [resolvable:$true] %s74
      %80 = dma.hbm_to_vmem [thread:$0]  %s73, 768, %s75, [#allocation9], 128, 128, 8
    $region37: #{tpu_custom_call.1} parent=1 // pred_fallthru
      _
    // Predicated region
    $region38: #{tpu_custom_call.1} parent=1 // pred_check
      _
    $region39: #{tpu_custom_call.1} parent=1 // pred_check_branch
      %82 = sbr.rel (0) target = $region41
    $region40: #{tpu_custom_call.1} parent=1 // pred_region
      _
    $region41: #{tpu_custom_call.1} parent=1 // pred_fallthru
      _
    // Predicated region
    $region42: #{tpu_custom_call.1} parent=1 // pred_check
      _
    $region43: #{tpu_custom_call.1} parent=1 // pred_check_branch
      %84 = sbr.rel (0) target = $region45
    $region44: #{tpu_custom_call.1} parent=1 // pred_region
      %86 = dma.done [#allocation3], 256
    $region45: #{tpu_custom_call.1} parent=1 // pred_fallthru
      _
    // Predicated region
    $region46: #{tpu_custom_call.1} parent=1 // pred_check
      _
    $region47: #{tpu_custom_call.1} parent=1 // pred_check_branch
      %88 = sbr.rel (0) target = $region49
    $region48: #{tpu_custom_call.1} parent=1 // pred_region
      %90 = dma.done [#allocation6], 256
    $region49: #{tpu_custom_call.1} parent=1 // pred_fallthru
      _
    // Predicated region
    $region50: #{tpu_custom_call.1} parent=1 // pred_check
      _
    $region51: #{tpu_custom_call.1} parent=1 // pred_check_branch
      %92 = sbr.rel (0) target = $region53
    $region52: #{tpu_custom_call.1} parent=1 // pred_region
      %94 = dma.done [#allocation6], 768
    $region53: #{tpu_custom_call.1} parent=1 // pred_fallthru
      _
    // Predicated region
    $region54: #{tpu_custom_call.1} parent=1 // pred_check
      _
    $region55: #{tpu_custom_call.1} parent=1 // pred_check_branch
      %96 = sbr.rel (0) target = $region57
    $region56: #{tpu_custom_call.1} parent=1 // pred_region
      %98 = dma.done [#allocation9], 768
    $region57: #{tpu_custom_call.1} parent=1 // pred_fallthru
      _
    %v99 = vld [vmem:[#allocation2] sm:$0xff]
    %v100 = vld [vmem:[#allocation2 + $0x8] sm:$0xff]
    %v101 = vld [vmem:[#allocation5] sm:$0xff]
    %v102 = vld [vmem:[#allocation5 + $0x8] sm:$0xff]
    %v103 = vld [vmem:[%s2] sm:$0xff]
    %v104 = vld [vmem:[%s2 + $0x8] sm:$0xff]
    %v105 = vld [vmem:[%s2 + $0x10] sm:$0xff]
    %v106 = vld [vmem:[%s2 + $0x18] sm:$0xff]
    %v107 = vld [vmem:[%s2 + $0x20] sm:$0xff]
    %v108 = vld [vmem:[%s2 + $0x28] sm:$0xff]
    %v109 = vld [vmem:[%s3] sm:$0x1]
    %v111 = vperm.slane %v109, 0
    %vm113 = vcmask 392192
    %v115 = vsel %vm113, %v99, 0
    %v118 = vsel %vm113, %v100, 0
    %120 = vmatpush.msra.mxu0 0.0
    %121 = vmatpush.msra.mxu0 0.0
    %122 = vmatpush.msra.mxu0 0.0
    %123 = vmatpush.msra.mxu0 0.0
    %124 = vmatpush.msra.mxu0 0.0
    %125 = vmatpush.msra.mxu0 0.0
    %126 = vmatpush.msra.mxu0 0.0
    %127 = vmatpush.msra.mxu0 0.0
    %128 = vmatpush.msra.mxu0 0.0
    %129 = vmatpush.msra.mxu0 0.0
    %130 = vmatpush.msra.mxu0 %v108
    %131 = vmatpush.msra.mxu0 %v107
    %132 = vmatpush.msra.mxu0 %v106
    %133 = vmatpush.msra.mxu0 %v105
    %134 = vmatpush.msra.mxu0 %v104
    %135 = vmatpush.msra.mxu0 %v103
    %136 = vmatmul.f32.gmra.mxu0 %v115
    %v137 = vpop.f32.mrf.mxu0
    %v138 = vadd.f32 %v111, %v137
    %139 = vmatmul.f32.gmra.mxu0 %v118
    %v140 = vpop.f32.mrf.mxu0
    %v141 = vadd.f32 %v111, %v140
    %142 = vdwg.mxu0
    %v143 = vld [vmem:[#allocation7] sm:$0xff]
    %v144 = vld [vmem:[#allocation7 + $0x8] sm:$0xff]
    %v145 = vld [vmem:[#allocation7 + $0x10] sm:$0xff]
    %v146 = vld [vmem:[#allocation7 + $0x18] sm:$0xff]
    %v147 = vld [vmem:[#allocation7 + $0x20] sm:$0xff]
    %v148 = vld [vmem:[#allocation7 + $0x28] sm:$0xff]
    %v149 = vld [vmem:[%s5] sm:$0x1]
    %v151 = vperm.slane %v149, 0
    %v154 = vsel %vm113, %v101, 0
    %v157 = vsel %vm113, %v102, 0
    %159 = vmatpush.msra.mxu0 0.0
    %160 = vmatpush.msra.mxu0 0.0
    %161 = vmatpush.msra.mxu0 0.0
    %162 = vmatpush.msra.mxu0 0.0
    %163 = vmatpush.msra.mxu0 0.0
    %164 = vmatpush.msra.mxu0 0.0
    %165 = vmatpush.msra.mxu0 0.0
    %166 = vmatpush.msra.mxu0 0.0
    %167 = vmatpush.msra.mxu0 0.0
    %168 = vmatpush.msra.mxu0 0.0
    %169 = vmatpush.msra.mxu0 %v148
    %170 = vmatpush.msra.mxu0 %v147
    %171 = vmatpush.msra.mxu0 %v146
    %172 = vmatpush.msra.mxu0 %v145
    %173 = vmatpush.msra.mxu0 %v144
    %174 = vmatpush.msra.mxu0 %v143
    %175 = vmatmul.f32.gmra.mxu0 %v154
    %v176 = vpop.f32.mrf.mxu0
    %v177 = vadd.f32 %v151, %v176
    %178 = vmatmul.f32.gmra.mxu0 %v157
    %v179 = vpop.f32.mrf.mxu0
    %v180 = vadd.f32 %v151, %v179
    %181 = vdwg.mxu0
    %v182 = vld [vmem:[%s6] sm:$0xff]
    %v183 = vld [vmem:[%s6 + $0x8] sm:$0xff]
    %v184 = vld [vmem:[%s6 + $0x10] sm:$0xff]
    %v185 = vld [vmem:[%s6 + $0x18] sm:$0xff]
    %v186 = vld [vmem:[%s6 + $0x20] sm:$0xff]
    %v187 = vld [vmem:[%s6 + $0x28] sm:$0xff]
    %v188 = vld [vmem:[%s6 + $0x30] sm:$0xff]
    %v189 = vld [vmem:[%s6 + $0x38] sm:$0xff]
    %v190 = vld [vmem:[%s6 + $0x40] sm:$0xff]
    %v191 = vld [vmem:[%s6 + $0x48] sm:$0xff]
    %v192 = vld [vmem:[%s6 + $0x50] sm:$0xff]
    %v193 = vld [vmem:[%s6 + $0x58] sm:$0xff]
    %v194 = vmul.f32 %v138, %v182
    %v195 = vmul.f32 %v138, %v183
    %v196 = vmul.f32 %v138, %v184
    %v197 = vmul.f32 %v138, %v185
    %v198 = vmul.f32 %v138, %v186
    %v199 = vmul.f32 %v138, %v187
    %v200 = vmul.f32 %v138, %v188
    %v201 = vmul.f32 %v138, %v189
    %v202 = vmul.f32 %v138, %v190
    %v203 = vmul.f32 %v138, %v191
    %v204 = vmul.f32 %v138, %v192
    %v205 = vmul.f32 %v138, %v193
    %v206 = vmul.f32 %v141, %v182
    %v207 = vmul.f32 %v141, %v183
    %v208 = vmul.f32 %v141, %v184
    %v209 = vmul.f32 %v141, %v185
    %v210 = vmul.f32 %v141, %v186
    %v211 = vmul.f32 %v141, %v187
    %v212 = vmul.f32 %v141, %v188
    %v213 = vmul.f32 %v141, %v189
    %v214 = vmul.f32 %v141, %v190
    %v215 = vmul.f32 %v141, %v191
    %v216 = vmul.f32 %v141, %v192
    %v217 = vmul.f32 %v141, %v193
    %v219 = vsel %vm113, %v177, 0
    %v222 = vsel %vm113, %v194, 0
    %v225 = vsel %vm113, %v195, 0
    %v228 = vsel %vm113, %v196, 0
    %v231 = vsel %vm113, %v197, 0
    %v234 = vsel %vm113, %v198, 0
    %v237 = vsel %vm113, %v199, 0
    %v240 = vsel %vm113, %v200, 0
    %v243 = vsel %vm113, %v201, 0
    %v246 = vsel %vm113, %v202, 0
    %v249 = vsel %vm113, %v203, 0
    %v252 = vsel %vm113, %v204, 0
    %v255 = vsel %vm113, %v205, 0
    %257 = vmatpush.xpose.msra.mxu0 0.0
    %258 = vmatpush.xpose.msra.mxu0 0.0
    %259 = vmatpush.xpose.msra.mxu0 0.0
    %260 = vmatpush.xpose.msra.mxu0 0.0
    %261 = vmatpush.xpose.msra.mxu0 %v255
    %262 = vmatpush.xpose.msra.mxu0 %v252
    %263 = vmatpush.xpose.msra.mxu0 %v249
    %264 = vmatpush.xpose.msra.mxu0 %v246
    %265 = vmatpush.xpose.msra.mxu0 %v243
    %266 = vmatpush.xpose.msra.mxu0 %v240
    %267 = vmatpush.xpose.msra.mxu0 %v237
    %268 = vmatpush.xpose.msra.mxu0 %v234
    %269 = vmatpush.xpose.msra.mxu0 %v231
    %270 = vmatpush.xpose.msra.mxu0 %v228
    %271 = vmatpush.xpose.msra.mxu0 %v225
    %272 = vmatpush.xpose.msra.mxu0 %v222
    %273 = vmatmul.f32.gmra.mxu0 %v219
    %v274 = vpop.f32.mrf.mxu0
    %v275 = vadd.f32 0.0, %v274
    %276 = vdwg.mxu0
    %v278 = vsel %vm113, %v180, 0
    %v281 = vsel %vm113, %v206, 0
    %v284 = vsel %vm113, %v207, 0
    %v287 = vsel %vm113, %v208, 0
    %v290 = vsel %vm113, %v209, 0
    %v293 = vsel %vm113, %v210, 0
    %v296 = vsel %vm113, %v211, 0
    %v299 = vsel %vm113, %v212, 0
    %v302 = vsel %vm113, %v213, 0
    %v305 = vsel %vm113, %v214, 0
    %v308 = vsel %vm113, %v215, 0
    %v311 = vsel %vm113, %v216, 0
    %v314 = vsel %vm113, %v217, 0
    %316 = vmatpush.xpose.msra.mxu0 0.0
    %317 = vmatpush.xpose.msra.mxu0 0.0
    %318 = vmatpush.xpose.msra.mxu0 0.0
    %319 = vmatpush.xpose.msra.mxu0 0.0
    %320 = vmatpush.xpose.msra.mxu0 %v314
    %321 = vmatpush.xpose.msra.mxu0 %v311
    %322 = vmatpush.xpose.msra.mxu0 %v308
    %323 = vmatpush.xpose.msra.mxu0 %v305
    %324 = vmatpush.xpose.msra.mxu0 %v302
    %325 = vmatpush.xpose.msra.mxu0 %v299
    %326 = vmatpush.xpose.msra.mxu0 %v296
    %327 = vmatpush.xpose.msra.mxu0 %v293
    %328 = vmatpush.xpose.msra.mxu0 %v290
    %329 = vmatpush.xpose.msra.mxu0 %v287
    %330 = vmatpush.xpose.msra.mxu0 %v284
    %331 = vmatpush.xpose.msra.mxu0 %v281
    %332 = vmatmul.f32.gmra.mxu0 %v278
    %v333 = vpop.f32.mrf.mxu0
    %v334 = vadd.f32 0.0, %v333
    %335 = vdwg.mxu0
    %vm336 = vcmask 785408
    %v337 = vsel %vm336, %v275, -inf
    %338 = vmax.xlane.f32.xlu0 %v337
    %v339 = vpop.xlane.xlu0 %338
    %v340 = vsel %vm336, %v334, -inf
    %341 = vmax.xlane.f32.xlu0 %v340
    %v342 = vpop.xlane.xlu0 %341
    %v343 = vsub.f32 %v275, %v339
    %v344 = vsub.f32 %v334, %v342
    %v345 = vmul.f32 %v343, 1.442695
    %v346 = vpow.pop %v345
    %v347 = vmul.f32 %v344, 1.442695
    %v348 = vpow.pop %v347
    %v349 = vld [vmem:[%s7] sm:$0xff]
    %v350 = vld [vmem:[%s7 + $0x8] sm:$0xff]
    %v351 = vld [vmem:[%s7 + $0x10] sm:$0xff]
    %v352 = vld [vmem:[%s7 + $0x18] sm:$0xff]
    %v353 = vld [vmem:[%s7 + $0x20] sm:$0xff]
    %v354 = vld [vmem:[%s7 + $0x28] sm:$0xff]
    %v355 = vld [vmem:[%s7 + $0x30] sm:$0xff]
    %v356 = vld [vmem:[%s7 + $0x38] sm:$0xff]
    %v357 = vld [vmem:[%s7 + $0x40] sm:$0xff]
    %v358 = vld [vmem:[%s7 + $0x48] sm:$0xff]
    %v359 = vld [vmem:[%s7 + $0x50] sm:$0xff]
    %v360 = vld [vmem:[%s7 + $0x58] sm:$0xff]
    %v362 = vsel %vm336, %v346, 0
    %v365 = vsel %vm336, %v348, 0
    %367 = vmatpush.msra.mxu0 0.0
    %368 = vmatpush.msra.mxu0 0.0
    %369 = vmatpush.msra.mxu0 0.0
    %370 = vmatpush.msra.mxu0 0.0
    %371 = vmatpush.msra.mxu0 %v360
    %372 = vmatpush.msra.mxu0 %v359
    %373 = vmatpush.msra.mxu0 %v358
    %374 = vmatpush.msra.mxu0 %v357
    %375 = vmatpush.msra.mxu0 %v356
    %376 = vmatpush.msra.mxu0 %v355
    %377 = vmatpush.msra.mxu0 %v354
    %378 = vmatpush.msra.mxu0 %v353
    %379 = vmatpush.msra.mxu0 %v352
    %380 = vmatpush.msra.mxu0 %v351
    %381 = vmatpush.msra.mxu0 %v350
    %382 = vmatpush.msra.mxu0 %v349
    %383 = vmatmul.f32.gmra.mxu0 %v362
    %v384 = vpop.f32.mrf.mxu0
    %v385 = vadd.f32 0.0, %v384
    %386 = vmatmul.f32.gmra.mxu0 %v365
    %v387 = vpop.f32.mrf.mxu0
    %v388 = vadd.f32 0.0, %v387
    %389 = vdwg.mxu0
    %v390 = vrcp.pop %v385
    %v391 = vmul.f32 %v385, %v390
    %v392 = vsub.f32 1.0, %v391
    %v393 = vmul.f32 %v390, %v392
    %v394 = vadd.f32 %v390, %v393
    %vm395 = vweird.f32 %v385
    %vm396 = vweird.f32 %v390
    %vm397 = vmor %vm395, %vm396
    %v398 = vsel %vm397, %v390, %v394
    %v399 = vand.u32 2147483647, %v385
    %vm400 = vcmp.eq.f32.partialorder %v399, 8.507059e+37
    %v401 = vand.u32 %v385, 2147483648
    %v402 = vor.u32 1.1754944e-38, %v401
    %v403 = vsel %vm400, %v402, %v398
    %v404 = vmul.f32 %v346, %v403
    %v405 = vrcp.pop %v388
    %v406 = vmul.f32 %v388, %v405
    %v407 = vsub.f32 1.0, %v406
    %v408 = vmul.f32 %v405, %v407
    %v409 = vadd.f32 %v405, %v408
    %vm410 = vweird.f32 %v388
    %vm411 = vweird.f32 %v405
    %vm412 = vmor %vm410, %vm411
    %v413 = vsel %vm412, %v405, %v409
    %v414 = vand.u32 2147483647, %v388
    %vm415 = vcmp.eq.f32.partialorder %v414, 8.507059e+37
    %v416 = vand.u32 %v388, 2147483648
    %v417 = vor.u32 1.1754944e-38, %v416
    %v418 = vsel %vm415, %v417, %v413
    %v419 = vmul.f32 %v348, %v418
    %v421 = vsel %vm336, %v404, 0
    %423 = vmatpush.msra.mxu0 0.0
    %424 = vmatpush.msra.mxu0 0.0
    %425 = vmatpush.msra.mxu0 0.0
    %426 = vmatpush.msra.mxu0 0.0
    %427 = vmatpush.msra.mxu0 %v205
    %428 = vmatpush.msra.mxu0 %v204
    %429 = vmatpush.msra.mxu0 %v203
    %430 = vmatpush.msra.mxu0 %v202
    %431 = vmatpush.msra.mxu0 %v201
    %432 = vmatpush.msra.mxu0 %v200
    %433 = vmatpush.msra.mxu0 %v199
    %434 = vmatpush.msra.mxu0 %v198
    %435 = vmatpush.msra.mxu0 %v197
    %436 = vmatpush.msra.mxu0 %v196
    %437 = vmatpush.msra.mxu0 %v195
    %438 = vmatpush.msra.mxu0 %v194
    %439 = vmatmul.f32.gmra.mxu0 %v421
    %v440 = vpop.f32.mrf.mxu0
    %v441 = vadd.f32 0.0, %v440
    %442 = vdwg.mxu0
    %v444 = vsel %vm336, %v419, 0
    %446 = vmatpush.msra.mxu0 0.0
    %447 = vmatpush.msra.mxu0 0.0
    %448 = vmatpush.msra.mxu0 0.0
    %449 = vmatpush.msra.mxu0 0.0
    %450 = vmatpush.msra.mxu0 %v217
    %451 = vmatpush.msra.mxu0 %v216
    %452 = vmatpush.msra.mxu0 %v215
    %453 = vmatpush.msra.mxu0 %v214
    %454 = vmatpush.msra.mxu0 %v213
    %455 = vmatpush.msra.mxu0 %v212
    %456 = vmatpush.msra.mxu0 %v211
    %457 = vmatpush.msra.mxu0 %v210
    %458 = vmatpush.msra.mxu0 %v209
    %459 = vmatpush.msra.mxu0 %v208
    %460 = vmatpush.msra.mxu0 %v207
    %461 = vmatpush.msra.mxu0 %v206
    %462 = vmatmul.f32.gmra.mxu0 %v444
    %v463 = vpop.f32.mrf.mxu0
    %v464 = vadd.f32 0.0, %v463
    %465 = vdwg.mxu0
    %v466 = vld [vmem:[#allocation8] sm:$0xff]
    %v467 = vld [vmem:[#allocation8 + $0x8] sm:$0xff]
    %v468 = vld [vmem:[#allocation8 + $0x10] sm:$0xff]
    %v469 = vld [vmem:[#allocation8 + $0x18] sm:$0xff]
    %v470 = vld [vmem:[#allocation8 + $0x20] sm:$0xff]
    %v471 = vld [vmem:[#allocation8 + $0x28] sm:$0xff]
    %v472 = vld [vmem:[%s9] sm:$0x1]
    %v474 = vperm.slane %v472, 0
    %v477 = vsel %vm113, %v441, 0
    %v480 = vsel %vm113, %v464, 0
    %482 = vmatpush.msra.mxu0 0.0
    %483 = vmatpush.msra.mxu0 0.0
    %484 = vmatpush.msra.mxu0 0.0
    %485 = vmatpush.msra.mxu0 0.0
    %486 = vmatpush.msra.mxu0 0.0
    %487 = vmatpush.msra.mxu0 0.0
    %488 = vmatpush.msra.mxu0 0.0
    %489 = vmatpush.msra.mxu0 0.0
    %490 = vmatpush.msra.mxu0 0.0
    %491 = vmatpush.msra.mxu0 0.0
    %492 = vmatpush.msra.mxu0 %v471
    %493 = vmatpush.msra.mxu0 %v470
    %494 = vmatpush.msra.mxu0 %v469
    %495 = vmatpush.msra.mxu0 %v468
    %496 = vmatpush.msra.mxu0 %v467
    %497 = vmatpush.msra.mxu0 %v466
    %498 = vmatmul.f32.gmra.mxu0 %v477
    %v499 = vpop.f32.mrf.mxu0
    %v500 = vadd.f32 %v474, %v499
    %501 = vmatmul.f32.gmra.mxu0 %v480
    %v502 = vpop.f32.mrf.mxu0
    %v503 = vadd.f32 %v474, %v502
    %504 = vdwg.mxu0
    %505 = vrot.lane.b32.xlu0 %v404, 48
    %v506 = vpop.permute.xlu0 %505
    %507 = vrot.lane.b32.xlu0 %v419, 48
    %v508 = vpop.permute.xlu0 %507
    %v511 = vsel %vm113, %v500, %v506
    %v512 = vsel %vm113, %v503, %v508
    %513 = vst [vmem:[#allocation10] sm:$0xff] %v511
    %vm514 = vcmask 130048
    %515 = vst.msk [vmem:[#allocation10 + $0x8] sm:$0xff] %vm514, %v506
    %516 = vst [vmem:[#allocation10 + $0x10] sm:$0xff] %v512
    %517 = vst.msk [vmem:[#allocation10 + $0x18] sm:$0xff] %vm514, %v508
    // Predicated region
    $region58: #{tpu_custom_call.1} parent=1 // pred_check
      _
    $region59: #{tpu_custom_call.1} parent=1 // pred_check_branch
      %519 = sbr.rel (0) target = $region61
    $region60: #{tpu_custom_call.1} parent=1 // pred_region
      %521 = vsyncadd [#allocation4], 0
      %s522 = sshll.u32 [#allocation10], 4
      %s523 = int_to_ptr.vmem [resolvable:$true] %s522
      %s524 = sshll.u32 %s10, 4
      %s525 = int_to_ptr.hbm [resolvable:$true] %s524
      %530 = dma.vmem_to_hbm [thread:$0]  %s523, 512, %s525, [#allocation4], 256, 256, 16
    $region61: #{tpu_custom_call.1} parent=1 // pred_fallthru
      _
    // Predicated region
    $region62: #{tpu_custom_call.1} parent=1 // pred_check
      _
    $region63: #{tpu_custom_call.1} parent=1 // pred_check_branch
      %532 = sbr.rel (0) target = $region65
    $region64: #{tpu_custom_call.1} parent=1 // pred_region
      %534 = dma.done [#allocation4], 512
    $region65: #{tpu_custom_call.1} parent=1 // pred_fallthru
      _
    %535 = vsyncpa [#allocation3], 1
    %536 = vsyncpa [#allocation6], 1
    %537 = vsyncpa [#allocation9], 1
    %538 = vsyncpa [#allocation4], 1

</llo_original>
